<compile_context>
chip_gen: v5e
topology: v5e:2x2
jax: 0.10.0
libtpu: 0.0.40
codegen_flags: <defaults>
</compile_context>

<pallas_src>
import jax
import jax.numpy as jnp
from jax.experimental import pallas as pl
from jax.experimental.pallas import tpu as pltpu

_BIG_NEG = float(jnp.finfo(jnp.float32).min)   # matches torch masked_fill(finfo.min)
_EPS = 1e-6


# --------------------------------------------------------------------------- small helpers
def _nbytes(shape, dtype):
    n = 1
    for s in shape:
        n *= int(s)
    return n * jnp.dtype(dtype).itemsize


def _vmem_limit(block_bytes, scratch_bytes=0):
    """Double-buffered blocks + scratch + headroom, clamped so v7x (64 MiB) keeps slack."""
    est = 2 * int(block_bytes) + int(scratch_bytes) + (4 << 20)
    return int(min(max(est, 16 << 20), 40 << 20))


def _tile(extent, preferred):
    """Full extent if it fits in one tile, else the preferred (8/128-aligned) tile."""
    return extent if extent <= preferred else preferred


# --------------------------------------------------------------------------- kernel 1: LN1 + QKV projection
def ln_qkv_matmul(x2, gamma, beta, wqkv, *, compute_dtype, tm=256, tn=512):
    """(M, d) f32 -> LayerNorm (fused) -> @ wqkv (d, 3d) -> (M, 3d) compute_dtype."""
    m, d = x2.shape
    n = wqkv.shape[1]
    tm_eff = _tile(m, tm)
    tn_eff = _tile(n, tn)
    g2 = gamma.reshape(1, d).astype(jnp.float32)
    b2 = beta.reshape(1, d).astype(jnp.float32)

    def kernel(x_ref, g_ref, b_ref, w_ref, o_ref):
        xv = x_ref[...].astype(jnp.float32)
        mu = jnp.mean(xv, axis=-1, keepdims=True)
        var = jnp.mean((xv - mu) ** 2, axis=-1, keepdims=True)
        xn = g_ref[...] * ((xv - mu) * jax.lax.rsqrt(var + _EPS)) + b_ref[...]
        o_ref[...] = jnp.dot(xn.astype(compute_dtype), w_ref[...],
                             preferred_element_type=jnp.float32).astype(o_ref.dtype)

    mt, nt = pl.cdiv(m, tm_eff), pl.cdiv(n, tn_eff)
    block_bytes = (_nbytes((tm_eff, d), x2.dtype) + _nbytes((d, tn_eff), wqkv.dtype)
                   + 2 * _nbytes((1, d), jnp.float32) + _nbytes((tm_eff, tn_eff), compute_dtype))
    bytes_accessed = (nt * _nbytes((m, d), x2.dtype) + mt * _nbytes((d, n), wqkv.dtype)
                      + _nbytes((m, n), compute_dtype) + 2 * _nbytes((1, d), jnp.float32))

    return pl.pallas_call(
        kernel,
        out_shape=jax.ShapeDtypeStruct((m, n), compute_dtype),
        grid_spec=pltpu.PrefetchScalarGridSpec(
            num_scalar_prefetch=0,
            grid=(mt, nt),
            in_specs=[
                pl.BlockSpec((tm_eff, d), lambda i, j: (i, 0)),
                pl.BlockSpec((1, d), lambda i, j: (0, 0)),
                pl.BlockSpec((1, d), lambda i, j: (0, 0)),
                pl.BlockSpec((d, tn_eff), lambda i, j: (0, j)),
            ],
            out_specs=pl.BlockSpec((tm_eff, tn_eff), lambda i, j: (i, j)),
        ),
        compiler_params=pltpu.CompilerParams(
            dimension_semantics=("parallel", "parallel"),
            vmem_limit_bytes=_vmem_limit(block_bytes)),
        cost_estimate=pl.CostEstimate(
            flops=2 * m * d * n, transcendentals=m * nt,
            bytes_accessed=int(bytes_accessed)),
    )(x2, g2, b2, wqkv)


# --------------------------------------------------------------------------- kernel 2: attention + W_o + residual
def attention_wo_residual(qkv3, mask, wo, x3, *, num_heads, compute_dtype):
    """qkv3: (B, L, 3*d_model) compute_dtype, mask: (B, 1, L), wo: (d_model, d_model),
    x3: (B, L, d_model) f32 residual. Returns x3 + Attention(q,k,v) @ W_o, (B, L, d_model)."""
    B, L, three_d = qkv3.shape
    d_model = three_d // 3
    dk = d_model // num_heads
    scale = 1.0 / (dk ** 0.5)

    def kernel(qkv_ref, m_ref, wo_ref, x_ref, o_ref):
        qkv = qkv_ref[0]                    # (L, 3*d_model) compute_dtype
        msk = m_ref[0]                      # (1, L)
        wo_v = wo_ref[...]                  # (d_model, d_model) compute_dtype
        acc = x_ref[0].astype(jnp.float32)  # start from the residual, (L, d_model)
        # Static unrolled head loop (H small); per-head slices are static lane slices.
        for h in range(num_heads):
            qh = qkv[:, h * dk:(h + 1) * dk]
            kh = qkv[:, d_model + h * dk:d_model + (h + 1) * dk]
            vh = qkv[:, 2 * d_model + h * dk:2 * d_model + (h + 1) * dk]
            # q . k^T contracted over dk in-kernel (no kT materialization in HBM).
            s = jax.lax.dot_general(qh, kh, (((1,), (1,)), ((), ())),
                                    preferred_element_type=jnp.float32) * scale
            s = jnp.where(msk == 0.0, _BIG_NEG, s)
            s = s - jnp.max(s, axis=-1, keepdims=True)
            p = jnp.exp(s)
            p = p * pl.reciprocal(jnp.sum(p, axis=-1, keepdims=True), approx=True)
            # TODO(synk): attention-probability dropout omitted (eval mode = identity).
            o_h = jnp.dot(p.astype(vh.dtype), vh, preferred_element_type=jnp.float32)
            # Fused W_o: attn @ W_o == sum_h o_h @ W_o[h*dk:(h+1)*dk, :]
            acc = acc + jnp.dot(o_h.astype(wo_v.dtype), wo_v[h * dk:(h + 1) * dk, :],
                                preferred_element_type=jnp.float32)
        o_ref[0] = acc.astype(o_ref.dtype)   # lane-dense (L, d_model) store

    block_bytes = (_nbytes((1, L, three_d), qkv3.dtype) + _nbytes((1, 1, L), mask.dtype)
                   + _nbytes((d_model, d_model), wo.dtype) + _nbytes((1, L, d_model), x3.dtype)
                   + _nbytes((1, L, d_model), compute_dtype))
    bytes_accessed = (_nbytes(qkv3.shape, qkv3.dtype) + _nbytes(mask.shape, mask.dtype)
                      + B * _nbytes(wo.shape, wo.dtype) + _nbytes(x3.shape, x3.dtype)
                      + _nbytes((B, L, d_model), compute_dtype))

    return pl.pallas_call(
        kernel,
        out_shape=jax.ShapeDtypeStruct((B, L, d_model), compute_dtype),
        grid_spec=pltpu.PrefetchScalarGridSpec(
            num_scalar_prefetch=0,
            grid=(B,),
            in_specs=[
                pl.BlockSpec((1, L, three_d), lambda b: (b, 0, 0)),
                pl.BlockSpec((1, 1, L), lambda b: (b, 0, 0)),
                pl.BlockSpec((d_model, d_model), lambda b: (0, 0)),
                pl.BlockSpec((1, L, d_model), lambda b: (b, 0, 0)),
            ],
            out_specs=pl.BlockSpec((1, L, d_model), lambda b: (b, 0, 0)),
        ),
        compiler_params=pltpu.CompilerParams(
            dimension_semantics=("parallel",),
            vmem_limit_bytes=_vmem_limit(block_bytes)),
        cost_estimate=pl.CostEstimate(
            flops=B * (4 * L * L * d_model + 2 * L * d_model * d_model),
            transcendentals=B * num_heads * L * L,
            bytes_accessed=int(bytes_accessed)),
    )(qkv3, mask, wo, x3)


# --------------------------------------------------------------------------- kernel 3: LN2 + FFN + residual
def ffn_ln_residual(y1, gamma, beta, w1, b1, w2, b2, *, compute_dtype,
                    tm=256, tf=512, out_dtype=jnp.float32):
    """y1 + (relu(LN2(y1) @ W1 + b1) @ W2 + b2), LN2 fused, d_ff tiled & accumulated
    directly into the resident output block. y1: (M, d_model) compute_dtype."""
    m, d_model = y1.shape
    d_ff = w1.shape[1]
    tm_eff = _tile(m, tm)
    if d_ff <= tf:
        tf_eff, d_ff_pad = d_ff, d_ff
    else:
        tf_eff = tf
        d_ff_pad = pl.cdiv(d_ff, tf) * tf
    if d_ff_pad != d_ff:
        # Zero-pad the hidden dim: relu(xn @ 0 + 0) = 0 and zero rows of W2 add nothing.
        w1 = jnp.pad(w1, ((0, 0), (0, d_ff_pad - d_ff)))
        b1 = jnp.pad(b1, ((0, d_ff_pad - d_ff),))
        w2 = jnp.pad(w2, ((0, d_ff_pad - d_ff), (0, 0)))

    w1c = w1.astype(compute_dtype)
    w2c = w2.astype(compute_dtype)
    b1_2 = b1.reshape(1, d_ff_pad).astype(jnp.float32)
    b2_2 = b2.reshape(1, d_model).astype(jnp.float32)
    g2 = gamma.reshape(1, d_model).astype(jnp.float32)
    be2 = beta.reshape(1, d_model).astype(jnp.float32)

    def kernel(y_ref, g_ref, b_ref, w1_ref, b1_ref, w2_ref, b2_ref, o_ref, xn_ref):
        j = pl.program_id(1)

        @pl.when(j == 0)
        def _prologue():
            # LN2 computed once per row tile into a VMEM scratch; o_ref zero-initialized.
            y = y_ref[...].astype(jnp.float32)
            mu = jnp.mean(y, axis=-1, keepdims=True)
            var = jnp.mean((y - mu) ** 2, axis=-1, keepdims=True)
            xn = g_ref[...] * ((y - mu) * jax.lax.rsqrt(var + _EPS)) + b_ref[...]
            xn_ref[...] = xn.astype(xn_ref.dtype)
            o_ref[...] = jnp.zeros_like(o_ref)

        h = jnp.dot(xn_ref[...], w1_ref[...], preferred_element_type=jnp.float32)
        h = jnp.maximum(h + b1_ref[...], 0.0)
        # TODO(synk): training-mode dropout on h not implemented (eval = identity).
        o_ref[...] += jnp.dot(h.astype(w2_ref.dtype), w2_ref[...],
                              preferred_element_type=jnp.float32).astype(o_ref.dtype)

        @pl.when(j == pl.num_programs(1) - 1)
        def _epilogue():
            # b2 and the residual are added exactly once.
            o_ref[...] = (o_ref[...].astype(jnp.float32) + b2_ref[...]
                          + y_ref[...].astype(jnp.float32)).astype(o_ref.dtype)

    mt, ft = pl.cdiv(m, tm_eff), d_ff_pad // tf_eff
    block_bytes = (_nbytes((tm_eff, d_model), y1.dtype) + 2 * _nbytes((1, d_model), jnp.float32)
                   + _nbytes((d_model, tf_eff), compute_dtype) + _nbytes((1, tf_eff), jnp.float32)
                   + _nbytes((tf_eff, d_model), compute_dtype) + _nbytes((1, d_model), jnp.float32)
                   + _nbytes((tm_eff, d_model), out_dtype))
    scratch_bytes = _nbytes((tm_eff, d_model), compute_dtype)
    bytes_accessed = (ft * _nbytes((m, d_model), y1.dtype)
                      + mt * (_nbytes((d_model, d_ff_pad), compute_dtype)
                              + _nbytes((d_ff_pad, d_model), compute_dtype))
                      + _nbytes((m, d_model), out_dtype)
                      + _nbytes((1, d_ff_pad), jnp.float32) + 3 * _nbytes((1, d_model), jnp.float32))

    return pl.pallas_call(
        kernel,
        out_shape=jax.ShapeDtypeStruct((m, d_model), out_dtype),
        grid_spec=pltpu.PrefetchScalarGridSpec(
            num_scalar_prefetch=0,
            grid=(mt, ft),
            in_specs=[
                pl.BlockSpec((tm_eff, d_model), lambda i, j: (i, 0)),   # y1 (LN input + residual)
                pl.BlockSpec((1, d_model), lambda i, j: (0, 0)),        # ln2 gamma
                pl.BlockSpec((1, d_model), lambda i, j: (0, 0)),        # ln2 beta
                pl.BlockSpec((d_model, tf_eff), lambda i, j: (0, j)),   # W1 chunk
                pl.BlockSpec((1, tf_eff), lambda i, j: (0, j)),         # b1 chunk
                pl.BlockSpec((tf_eff, d_model), lambda i, j: (j, 0)),   # W2 chunk
                pl.BlockSpec((1, d_model), lambda i, j: (0, 0)),        # b2
            ],
            out_specs=pl.BlockSpec((tm_eff, d_model), lambda i, j: (i, 0)),
            scratch_shapes=[pltpu.VMEM((tm_eff, d_model), compute_dtype)],
        ),
        compiler_params=pltpu.CompilerParams(
            dimension_semantics=("parallel", "arbitrary"),
            vmem_limit_bytes=_vmem_limit(block_bytes, scratch_bytes)),
        cost_estimate=pl.CostEstimate(
            flops=4 * m * d_model * d_ff_pad, transcendentals=m,
            bytes_accessed=int(bytes_accessed)),
    )(y1, g2, be2, w1c, b1_2, w2c, b2_2)


# --------------------------------------------------------------------------- full encoder block
def encoder_block(x, mask, params, *, num_heads, compute_dtype=jnp.bfloat16,
                  tm=256, tn=512, tf=512):
    """x: (B, L, d_model); mask: (B, 1, L) with 1=keep, 0=mask. Returns (B, L, d_model) f32."""
    B, L, d_model = x.shape
    assert d_model % num_heads == 0
    M = B * L
    x2 = x.reshape(M, d_model).astype(jnp.float32)

    # --- residual connection 0: x + W_o @ Attention(LN1(x)) (fused LN + QKV, fused attn + W_o) ---
    wqkv = jnp.concatenate([params["wq"], params["wk"], params["wv"]], axis=1).astype(compute_dtype)
    qkv = ln_qkv_matmul(x2, params["ln1_g"], params["ln1_b"], wqkv,
                        compute_dtype=compute_dtype, tm=tm, tn=tn)      # (M, 3*d_model)
    qkv3 = qkv.reshape(B, L, 3 * d_model)                               # pure view, no transpose
    y1 = attention_wo_residual(qkv3, mask, params["wo"].astype(compute_dtype),
                               x2.reshape(B, L, d_model),
                               num_heads=num_heads, compute_dtype=compute_dtype)

    # --- residual connection 1: y1 + FFN(LN2(y1)) (fused LN + FFN + residual) -------------------
    y2 = ffn_ln_residual(y1.reshape(M, d_model), params["ln2_g"], params["ln2_b"],
                         params["w1"], params["b1"], params["w2"], params["b2"],
                         compute_dtype=compute_dtype, tm=tm, tf=tf,
                         out_dtype=jnp.float32)
    return y2.reshape(B, L, d_model)


# --------------------------------------------------------------------------- pure-JAX reference
def reference_encoder_block(x, mask, p, *, num_heads):
    P = jax.lax.Precision.HIGHEST
    B, L, d_model = x.shape
    dk = d_model // num_heads

    def ln(t, g, b):
        mu = t.mean(-1, keepdims=True)
        var = ((t - mu) ** 2).mean(-1, keepdims=True)
        return g * (t - mu) / jnp.sqrt(var + _EPS) + b

    xn = ln(x, p["ln1_g"], p["ln1_b"])
    q = jnp.einsum("bld,de->ble", xn, p["wq"], precision=P)
    k = jnp.einsum("bld,de->ble", xn, p["wk"], precision=P)
    v = jnp.einsum("bld,de->ble", xn, p["wv"], precision=P)

    def heads(t):
        return t.reshape(B, L, num_heads, dk).transpose(0, 2, 1, 3)

    qh, kh, vh = heads(q), heads(k), heads(v)
    s = jnp.einsum("bhqd,bhkd->bhqk", qh, kh, precision=P) / (dk ** 0.5)
    s = jnp.where(mask.reshape(B, 1, 1, L) == 0.0, _BIG_NEG, s)
    pr = jax.nn.softmax(s, axis=-1)
    o = jnp.einsum("bhqk,bhkd->bhqd", pr, vh, precision=P)
    o = o.transpose(0, 2, 1, 3).reshape(B, L, d_model)
    y1 = x + jnp.einsum("bld,de->ble", o, p["wo"], precision=P)

    yn = ln(y1, p["ln2_g"], p["ln2_b"])
    h = jnp.maximum(jnp.einsum("bld,df->blf", yn, p["w1"], precision=P) + p["b1"], 0.0)
    return y1 + jnp.einsum("blf,fd->bld", h, p["w2"], precision=P) + p["b2"]


# --------------------------------------------------------------------------- demo / self-check
if __name__ == "__main__":
    B, L, d_model, d_ff, H = 2, 8, 32, 64, 4   # dropout p=0.1 in the module; identity in eval mode

    key = jax.random.PRNGKey(0)
    ks = jax.random.split(key, 9)
    x = jax.random.normal(ks[0], (B, L, d_model), dtype=jnp.float32)
    # src_mask: (B, 1, L) key-padding mask; last key of batch 1 masked out.
    mask = jnp.ones((B, 1, L), jnp.float32).at[1, 0, L - 1].set(0.0)

    def uni(k, shape, fan_in):
        b = 1.0 / (fan_in ** 0.5)
        return jax.random.uniform(k, shape, jnp.float32, -b, b)

    params = dict(
        wq=uni(ks[1], (d_model, d_model), d_model),
        wk=uni(ks[2], (d_model, d_model), d_model),
        wv=uni(ks[3], (d_model, d_model), d_model),
        wo=uni(ks[4], (d_model, d_model), d_model),
        w1=uni(ks[5], (d_model, d_ff), d_model),
        b1=uni(ks[6], (d_ff,), d_model),
        w2=uni(ks[7], (d_ff, d_model), d_ff),
        b2=uni(ks[8], (d_model,), d_ff),
        ln1_g=jnp.ones((d_model,), jnp.float32),
        ln1_b=jnp.zeros((d_model,), jnp.float32),
        ln2_g=jnp.ones((d_model,), jnp.float32),
        ln2_b=jnp.zeros((d_model,), jnp.float32),
    )

    ref = reference_encoder_block(x, mask, params, num_heads=H)

    # f32 compute path: tight correctness check against the module semantics.
    out_f32 = jax.block_until_ready(
        encoder_block(x, mask, params, num_heads=H, compute_dtype=jnp.float32))
    assert out_f32.shape == (B, L, d_model)
    assert jnp.allclose(out_f32, ref, atol=5e-3, rtol=5e-3), "f32 kernel mismatch vs reference"

    # bf16 MXU / bf16-activation path (production/perf configuration): loose numerical check.
    out_bf16 = jax.block_until_ready(
        encoder_block(x, mask, params, num_heads=H, compute_dtype=jnp.bfloat16))
    assert out_bf16.shape == (B, L, d_model)
    assert jnp.allclose(out_bf16, ref, atol=1e-1, rtol=1e-1), "bf16 kernel mismatch vs reference"

    print("KERNEL_OK")
</pallas_src>

<mosaic_0001>
module attributes {stable_mosaic.version = 11 : i64} {
  func.func @kernel(%arg0: i32, %arg1: i32, %arg2: memref<16x32xf32, #tpu.memory_space<vmem>>, %arg3: memref<1x32xf32, #tpu.memory_space<vmem>>, %arg4: memref<1x32xf32, #tpu.memory_space<vmem>>, %arg5: memref<32x96xf32, #tpu.memory_space<vmem>>, %arg6: memref<16x96xf32, #tpu.memory_space<vmem>>) attributes {dimension_semantics = [#tpu.dimension_semantics<parallel>, #tpu.dimension_semantics<parallel>], iteration_bounds = array<i64: 1, 1>, scalar_prefetch = 0 : i64, scratch_operands = 0 : i64, tpu.core_type = #tpu.core_type<tc>, window_params = [{transform_indices = @transform_0, window_bounds = array<i64: 16, 32>}, {pipeline_mode = #tpu.pipeline_mode<synchronous>, transform_indices = @transform_1, window_bounds = array<i64: 1, 32>}, {pipeline_mode = #tpu.pipeline_mode<synchronous>, transform_indices = @transform_2, window_bounds = array<i64: 1, 32>}, {transform_indices = @transform_3, window_bounds = array<i64: 32, 96>}, {transform_indices = @transform_4, window_bounds = array<i64: 16, 96>}]} {
    %c0 = arith.constant 0 : index
    %c0_0 = arith.constant 0 : index
    %0 = vector.load %arg2[%c0, %c0_0] : memref<16x32xf32, #tpu.memory_space<vmem>>, vector<16x32xf32>
    %cst = arith.constant dense<0.000000e+00> : vector<16xf32>
    %1 = vector.multi_reduction <add>, %0, %cst [1] : vector<16x32xf32> to vector<16xf32>
    %2 = vector.shape_cast %1 : vector<16xf32> to vector<16x1xf32>
    %cst_1 = arith.constant 3.200000e+01 : f32
    %3 = vector.broadcast %cst_1 : f32 to vector<16x1xf32>
    %4 = arith.divf %2, %3 : vector<16x1xf32>
    %5 = vector.broadcast %4 : vector<16x1xf32> to vector<16x32xf32>
    %6 = arith.subf %0, %5 : vector<16x32xf32>
    %7 = arith.mulf %6, %6 : vector<16x32xf32>
    %cst_2 = arith.constant dense<0.000000e+00> : vector<16xf32>
    %8 = vector.multi_reduction <add>, %7, %cst_2 [1] : vector<16x32xf32> to vector<16xf32>
    %9 = vector.shape_cast %8 : vector<16xf32> to vector<16x1xf32>
    %cst_3 = arith.constant 3.200000e+01 : f32
    %10 = vector.broadcast %cst_3 : f32 to vector<16x1xf32>
    %11 = arith.divf %9, %10 : vector<16x1xf32>
    %c0_4 = arith.constant 0 : index
    %c0_5 = arith.constant 0 : index
    %12 = vector.load %arg3[%c0_4, %c0_5] : memref<1x32xf32, #tpu.memory_space<vmem>>, vector<1x32xf32>
    %13 = vector.broadcast %4 : vector<16x1xf32> to vector<16x32xf32>
    %14 = arith.subf %0, %13 : vector<16x32xf32>
    %cst_6 = arith.constant 9.99999997E-7 : f32
    %15 = vector.broadcast %cst_6 : f32 to vector<16x1xf32>
    %16 = arith.addf %11, %15 : vector<16x1xf32>
    %17 = math.rsqrt %16 : vector<16x1xf32>
    %18 = vector.broadcast %17 : vector<16x1xf32> to vector<16x32xf32>
    %19 = arith.mulf %14, %18 : vector<16x32xf32>
    %20 = vector.broadcast %12 : vector<1x32xf32> to vector<16x32xf32>
    %21 = arith.mulf %20, %19 : vector<16x32xf32>
    %c0_7 = arith.constant 0 : index
    %c0_8 = arith.constant 0 : index
    %22 = vector.load %arg4[%c0_7, %c0_8] : memref<1x32xf32, #tpu.memory_space<vmem>>, vector<1x32xf32>
    %23 = vector.broadcast %22 : vector<1x32xf32> to vector<16x32xf32>
    %24 = arith.addf %21, %23 : vector<16x32xf32>
    %c0_9 = arith.constant 0 : index
    %c0_10 = arith.constant 0 : index
    %25 = vector.load %arg5[%c0_9, %c0_10] : memref<32x96xf32, #tpu.memory_space<vmem>>, vector<32x96xf32>
    %cst_11 = arith.constant dense<0.000000e+00> : vector<16x96xf32>
    %26 = tpu.matmul %24, %25, %cst_11 {dimension_numbers = #tpu.dot_dimension_numbers<[1], [0], [0], [1], [0, 0, 1, 1], [], []>} : vector<16x32xf32>, vector<32x96xf32>, vector<16x96xf32> -> vector<16x96xf32>
    %c0_12 = arith.constant 0 : index
    %c0_13 = arith.constant 0 : index
    %27 = vector.load %arg6[%c0_12, %c0_13] : memref<16x96xf32, #tpu.memory_space<vmem>>, vector<16x96xf32>
    tpu.vector_store %arg6[%c0_12, %c0_13], %26 {strides = array<i32>} : memref<16x96xf32, #tpu.memory_space<vmem>>, vector<16x96xf32>,
    return
  }
  func.func @transform_0(%arg0: i32, %arg1: i32) -> (i32, i32) {
    %c0_i32 = arith.constant 0 : i32
    %c0_i32_0 = arith.constant 0 : i32
    return %arg0, %c0_i32 : i32, i32
  }
  func.func @transform_1(%arg0: i32, %arg1: i32) -> (i32, i32) {
    %c0_i32 = arith.constant 0 : i32
    %c0_i32_0 = arith.constant 0 : i32
    %c0_i32_1 = arith.constant 0 : i32
    return %c0_i32, %c0_i32_0 : i32, i32
  }
  func.func @transform_2(%arg0: i32, %arg1: i32) -> (i32, i32) {
    %c0_i32 = arith.constant 0 : i32
    %c0_i32_0 = arith.constant 0 : i32
    %c0_i32_1 = arith.constant 0 : i32
    return %c0_i32, %c0_i32_0 : i32, i32
  }
  func.func @transform_3(%arg0: i32, %arg1: i32) -> (i32, i32) {
    %c0_i32 = arith.constant 0 : i32
    %c0_i32_0 = arith.constant 0 : i32
    return %c0_i32, %arg1 : i32, i32
  }
  func.func @transform_4(%arg0: i32, %arg1: i32) -> (i32, i32) {
    %c0_i32 = arith.constant 0 : i32
    return %arg0, %arg1 : i32, i32
  }
}

</mosaic_0001>

<llo_original>
// kernel: tpu_custom_call.1
$region0: #{tpu_custom_call.1}
  #allocation0 [shape = 'u32[]', space=smem, size = 0x4, offset = 0x4, fixed_abs, tag = 'smem constant byte address 0x4 - core index']
  #allocation1 [shape = 'u32[72,128]{1,0:T(1,128)}', space=vmem, size = 0x9000, scoped, tag = 'internal scratch']
  %s0 = inlined_call_operand.hbm [shape: f32[16,32], index: 0, kind: input, shape index: {}]
  %s1 = inlined_call_operand.hbm [shape: f32[1,32], index: 1, kind: input, shape index: {}]
  %s2 = inlined_call_operand.vmem [shape: f32[1,32], index: 2, kind: input, shape index: {}]
  %s3 = inlined_call_operand.hbm [shape: f32[32,96], index: 3, kind: input, shape index: {}]
  %s4 = inlined_call_operand.hbm [shape: f32[16,96], index: 4, kind: output, shape index: {}]
  %s5 = sld [smem:[#allocation0]]
  $region38: #{tpu_custom_call.1} parent=0
    _
  %s7 = ssub.s32 1, %s5
  %s8 = scalar_select 0, %s7, %s5
  $region1: #{tpu_custom_call.1} parent=0
    #allocation2 [shape = 'u8[8192]{0}', space=vmem, size = 0x2000, scoped, tag = 'input window, operand 0, single buffered']
    #allocation3 [shape = 's32[1]{0}', space=sflag, size = 0x4, scoped, tag = 'scoped memory for tpu_custom_call.1']
    #allocation4 [shape = 's32[1]{0}', space=sflag, size = 0x4, scoped, tag = 'scoped memory for tpu_custom_call.1']
    #allocation5 [shape = 'u8[512]{0}', space=vmem, size = 0x400, scoped, tag = 'input window, operand 1, single buffered']
    #allocation6 [shape = 's32[1]{0}', space=sflag, size = 0x4, scoped, tag = 'scoped memory for tpu_custom_call.1']
    #allocation7 [shape = 'u8[16384]{0}', space=vmem, size = 0x4000, scoped, tag = 'input window, operand 3, single buffered']
    #allocation8 [shape = 'u8[8192]{0}', space=vmem, size = 0x2000, scoped, tag = 'output window, operand 0, single buffered']
    %9 = vsyncpa [#allocation3], 0
    %10 = vsyncpa [#allocation6], 0
    %11 = vsyncpa [#allocation4], 0
    // Predicated region
    $region2: #{tpu_custom_call.1} parent=1 // pred_check
      _
    $region3: #{tpu_custom_call.1} parent=1 // pred_check_branch
      %13 = sbr.rel (0) target = $region5
    $region4: #{tpu_custom_call.1} parent=1 // pred_region
      %15 = vsyncadd [#allocation3], 0
      %s16 = sshll.u32 %s0, 4
      %s17 = int_to_ptr.hbm [resolvable:$true] %s16
      %s18 = sshll.u32 [#allocation2], 4
      %s19 = int_to_ptr.vmem [resolvable:$true] %s18
      %24 = dma.hbm_to_vmem [thread:$0]  %s17, 256, %s19, [#allocation3], 128, 128, 8
    $region5: #{tpu_custom_call.1} parent=1 // pred_fallthru
      _
    // Predicated region
    $region6: #{tpu_custom_call.1} parent=1 // pred_check
      _
    $region7: #{tpu_custom_call.1} parent=1 // pred_check_branch
      %26 = sbr.rel (0) target = $region9
    $region8: #{tpu_custom_call.1} parent=1 // pred_region
      %28 = vsyncadd [#allocation6], 0
      %s30 = sshll.u32 %s1, 4
      %s31 = int_to_ptr.hbm [resolvable:$true] %s30
      %s32 = sshll.u32 [#allocation5], 4
      %s33 = int_to_ptr.vmem [resolvable:$true] %s32
      %35 = dma.hbm_to_vmem [thread:$0]  %s31, 16, %s33, [#allocation6]
    $region9: #{tpu_custom_call.1} parent=1 // pred_fallthru
      _
    // Predicated region
    $region10: #{tpu_custom_call.1} parent=1 // pred_check
      _
    $region11: #{tpu_custom_call.1} parent=1 // pred_check_branch
      %37 = sbr.rel (0) target = $region13
    $region12: #{tpu_custom_call.1} parent=1 // pred_region
      _
    $region13: #{tpu_custom_call.1} parent=1 // pred_fallthru
      _
    // Predicated region
    $region14: #{tpu_custom_call.1} parent=1 // pred_check
      _
    $region15: #{tpu_custom_call.1} parent=1 // pred_check_branch
      %39 = sbr.rel (0) target = $region17
    $region16: #{tpu_custom_call.1} parent=1 // pred_region
      %41 = vsyncadd [#allocation6], 0
      %s42 = sshll.u32 %s3, 4
      %s43 = int_to_ptr.hbm [resolvable:$true] %s42
      %s44 = sshll.u32 [#allocation7], 4
      %s45 = int_to_ptr.vmem [resolvable:$true] %s44
      %50 = dma.hbm_to_vmem [thread:$0]  %s43, 512, %s45, [#allocation6], 128, 128, 8
    $region17: #{tpu_custom_call.1} parent=1 // pred_fallthru
      _
    // Predicated region
    $region18: #{tpu_custom_call.1} parent=1 // pred_check
      _
    $region19: #{tpu_custom_call.1} parent=1 // pred_check_branch
      %52 = sbr.rel (0) target = $region21
    $region20: #{tpu_custom_call.1} parent=1 // pred_region
      %54 = dma.done [#allocation3], 256
    $region21: #{tpu_custom_call.1} parent=1 // pred_fallthru
      _
    // Predicated region
    $region22: #{tpu_custom_call.1} parent=1 // pred_check
      _
    $region23: #{tpu_custom_call.1} parent=1 // pred_check_branch
      %56 = sbr.rel (0) target = $region25
    $region24: #{tpu_custom_call.1} parent=1 // pred_region
      %58 = dma.done [#allocation6], 16
    $region25: #{tpu_custom_call.1} parent=1 // pred_fallthru
      _
    // Predicated region
    $region26: #{tpu_custom_call.1} parent=1 // pred_check
      _
    $region27: #{tpu_custom_call.1} parent=1 // pred_check_branch
      %60 = sbr.rel (0) target = $region29
    $region28: #{tpu_custom_call.1} parent=1 // pred_region
      %62 = dma.done [#allocation6], 512
    $region29: #{tpu_custom_call.1} parent=1 // pred_fallthru
      _
    %v63 = vld [vmem:[#allocation2] sm:$0xff]
    %v64 = vld [vmem:[#allocation2 + $0x8] sm:$0xff]
    %vm65 = vcmask 261120
    %v66 = vsel %vm65, %v63, 0.0
    %67 = vadd.xlane.f32.xlu0 %v66
    %v68 = vpop.xlane.xlu0 %67
    %v69 = vsel %vm65, %v64, 0.0
    %70 = vadd.xlane.f32.xlu0 %v69
    %v71 = vpop.xlane.xlu0 %70
    %v72 = vrcp.pop 32.0
    %v73 = vmul.f32 32.0, %v72
    %v74 = vsub.f32 1.0, %v73
    %v75 = vmul.f32 %v72, %v74
    %v76 = vadd.f32 %v72, %v75
    %vm77 = vweird.f32 %v72
    %v78 = vsel %vm77, %v72, %v76
    %v79 = vmul.f32 %v68, %v78
    %v80 = vmul.f32 %v71, %v78
    %v81 = vsub.f32 %v63, %v79
    %v82 = vsub.f32 %v64, %v80
    %v83 = vmul.f32 %v81, %v81
    %v84 = vmul.f32 %v82, %v82
    %v85 = vsel %vm65, %v83, 0.0
    %86 = vadd.xlane.f32.xlu0 %v85
    %v87 = vpop.xlane.xlu0 %86
    %v88 = vsel %vm65, %v84, 0.0
    %89 = vadd.xlane.f32.xlu0 %v88
    %v90 = vpop.xlane.xlu0 %89
    %v91 = vmul.f32 %v87, %v78
    %v92 = vmul.f32 %v90, %v78
    %v93 = vld [vmem:[#allocation5] sm:$0x1]
    %v94 = vadd.f32 %v91, 1e-06
    %v95 = vadd.f32 %v92, 1e-06
    %v96 = vrsqrt.pop %v94
    %v97 = vmul.f32 %v96, %v94
    %v98 = vmul.f32 %v97, %v96
    %v99 = vmul.f32 0.5, %v98
    %v100 = vsub.f32 1.5, %v99
    %v101 = vmul.f32 %v96, %v100
    %vm102 = vweird.f32 %v94
    %vm103 = vweird.f32 %v96
    %vm104 = vmor %vm102, %vm103
    %v105 = vsel %vm104, %v96, %v101
    %v106 = vrsqrt.pop %v95
    %v107 = vmul.f32 %v106, %v95
    %v108 = vmul.f32 %v107, %v106
    %v109 = vmul.f32 0.5, %v108
    %v110 = vsub.f32 1.5, %v109
    %v111 = vmul.f32 %v106, %v110
    %vm112 = vweird.f32 %v95
    %vm113 = vweird.f32 %v106
    %vm114 = vmor %vm112, %vm113
    %v115 = vsel %vm114, %v106, %v111
    %v116 = vmul.f32 %v81, %v105
    %v117 = vmul.f32 %v82, %v115
    %v119 = vperm.slane %v93, 0
    %v121 = vmul.f32 %v119, %v116
    %v122 = vmul.f32 %v119, %v117
    %v123 = vld [vmem:[%s2] sm:$0x1]
    %v125 = vperm.slane %v123, 0
    %v127 = vadd.f32 %v121, %v125
    %v128 = vadd.f32 %v122, %v125
    %v129 = vld [vmem:[#allocation7] sm:$0xff]
    %v130 = vld [vmem:[#allocation7 + $0x8] sm:$0xff]
    %v131 = vld [vmem:[#allocation7 + $0x10] sm:$0xff]
    %v132 = vld [vmem:[#allocation7 + $0x18] sm:$0xff]
    %v134 = vsel %vm65, %v127, 0
    %v137 = vsel %vm65, %v128, 0
    %139 = vmatpush.msra.mxu0 0.0
    %140 = vmatpush.msra.mxu0 0.0
    %141 = vmatpush.msra.mxu0 0.0
    %142 = vmatpush.msra.mxu0 0.0
    %143 = vmatpush.msra.mxu0 0.0
    %144 = vmatpush.msra.mxu0 0.0
    %145 = vmatpush.msra.mxu0 0.0
    %146 = vmatpush.msra.mxu0 0.0
    %147 = vmatpush.msra.mxu0 0.0
    %148 = vmatpush.msra.mxu0 0.0
    %149 = vmatpush.msra.mxu0 0.0
    %150 = vmatpush.msra.mxu0 0.0
    %151 = vmatpush.msra.mxu0 %v132
    %152 = vmatpush.msra.mxu0 %v131
    %153 = vmatpush.msra.mxu0 %v130
    %154 = vmatpush.msra.mxu0 %v129
    %155 = vmatmul.f32.gmra.mxu0 %v134
    %v156 = vpop.f32.mrf.mxu0
    %v157 = vadd.f32 0.0, %v156
    %158 = vmatmul.f32.gmra.mxu0 %v137
    %v159 = vpop.f32.mrf.mxu0
    %v160 = vadd.f32 0.0, %v159
    %161 = vdwg.mxu0
    %vm162 = vcmask 785408
    %163 = vst.msk [vmem:[#allocation8] sm:$0xff] %vm162, %v157
    %164 = vst.msk [vmem:[#allocation8 + $0x8] sm:$0xff] %vm162, %v160
    // Predicated region
    $region30: #{tpu_custom_call.1} parent=1 // pred_check
      _
    $region31: #{tpu_custom_call.1} parent=1 // pred_check_branch
      %166 = sbr.rel (0) target = $region33
    $region32: #{tpu_custom_call.1} parent=1 // pred_region
      %168 = vsyncadd [#allocation4], 0
      %s169 = sshll.u32 [#allocation8], 4
      %s170 = int_to_ptr.vmem [resolvable:$true] %s169
      %s171 = sshll.u32 %s4, 4
      %s172 = int_to_ptr.hbm [resolvable:$true] %s171
      %177 = dma.vmem_to_hbm [thread:$0]  %s170, 256, %s172, [#allocation4], 128, 128, 8
    $region33: #{tpu_custom_call.1} parent=1 // pred_fallthru
      _
    // Predicated region
    $region34: #{tpu_custom_call.1} parent=1 // pred_check
      _
    $region35: #{tpu_custom_call.1} parent=1 // pred_check_branch
      %179 = sbr.rel (0) target = $region37
    $region36: #{tpu_custom_call.1} parent=1 // pred_region
      %181 = dma.done [#allocation4], 256
    $region37: #{tpu_custom_call.1} parent=1 // pred_fallthru
      _
    %182 = vsyncpa [#allocation3], 1
    %183 = vsyncpa [#allocation6], 1
    %184 = vsyncpa [#allocation4], 1

</llo_original>
